<compile_context>
chip_gen: v5e
topology: v5e:2x2
jax: 0.10.0
libtpu: 0.0.40
codegen_flags: <defaults>
</compile_context>

<pallas_src>
import jax
import jax.numpy as jnp
import numpy as np
from jax.experimental import pallas as pl
from jax.experimental.pallas import tpu as pltpu  # noqa: F401  (used by the future tiled/sparse variant)

_LANE = 128


def _round_up(n, m):
    return ((n + m - 1) // m) * m


def _mxu_row_tile():
    """Row-dim rounding for the matmul-ordering heuristic (MXU tile width)."""
    try:
        kind = jax.devices()[0].device_kind.lower()
        if "v6" in kind or "v7" in kind:
            return 256
    except Exception:
        pass
    return 128


def make_fused_sage_kernel(n_layers, dst_counts, paths):
    """Build the fused multi-layer SAGEConv kernel body.

    Positional ref layout (single grid point, everything VMEM-resident):
      a_0 .. a_{L-1}     bf16 [n_dst_i, n_src_i]  binary adjacency (1 = edge)
      r_0 .. r_{L-1}     f32  [n_dst_i, 1]        reciprocal degree (mean normalization)
      x                  bf16 [n_src_0, f_0]      source features (real K, unpadded)
      per layer i:
        path 'ax':  wcat_i bf16 [2*f_i, f_out_i],  b_i f32 [1, f_out_i]
        path 'xw':  wn_i / ws_i bf16 [f_i, f_out_i],  b_i f32 [1, f_out_i]
      o                  f32  [n_dst_{L-1}, out_pad]   (lane-dense padded final store)
    Intermediates never touch VMEM scratch; they stay as live bf16 values.
    """

    def kernel(*refs):
        a_refs = refs[:n_layers]
        r_refs = refs[n_layers:2 * n_layers]
        x_ref = refs[2 * n_layers]
        w_refs = refs[2 * n_layers + 1:-1]
        o_ref = refs[-1]

        h = x_ref[...]                       # bf16 source features, carried in vregs
        w_idx = 0
        for i in range(n_layers):
            n_dst = dst_counts[i]
            a = a_refs[i][...]               # bf16 binary adjacency [n_dst, n_src]
            rdeg = r_refs[i][...]            # f32 [n_dst, 1]
            xd = h[:n_dst, :]                # dst features = prefix of src (no extra DMA)

            if paths[i] == "ax":
                wcat_ref = w_refs[w_idx]     # bf16 [2*f_in, f_out] = [Wn ; Ws]
                b_ref = w_refs[w_idx + 1]
                w_idx += 2
                # mean aggregation: binary A @ X (f32 acc), then f32 rdeg scale on the VPU
                agg = jnp.dot(a, h, preferred_element_type=jnp.float32) * rdeg
                # single fused K=2*f_in matmul: [agg | xd] @ [Wn ; Ws]
                z = jnp.concatenate([agg.astype(jnp.bfloat16), xd], axis=1)
                out = jnp.dot(z, wcat_ref[...],
                              preferred_element_type=jnp.float32) + b_ref[...]
            else:
                wn_ref = w_refs[w_idx]
                ws_ref = w_refs[w_idx + 1]
                b_ref = w_refs[w_idx + 2]
                w_idx += 3
                # A @ (X @ Wn) ordering (cheaper when f_out << f_in at real sizes)
                xw = jnp.dot(h, wn_ref[...], preferred_element_type=jnp.float32)
                neigh = jnp.dot(a, xw.astype(jnp.bfloat16),
                                preferred_element_type=jnp.float32) * rdeg
                out = (neigh
                       + jnp.dot(xd, ws_ref[...], preferred_element_type=jnp.float32)
                       + b_ref[...])

            if 0 < i < n_layers - 1:         # activation only on middle layers (matches torch code)
                out = jnp.maximum(out, 0.0)
            # dropout = identity (eval mode)

            if i == n_layers - 1:
                o_ref[...] = out.astype(o_ref.dtype)   # lane-dense (N-padded) final store
            else:
                h = out.astype(jnp.bfloat16)           # one cast per layer; stays in vregs

    return kernel


def sage_model_forward(adj_list, dst_counts, x, params, n_classes):
    """Fused multi-layer GraphSAGE forward (mean aggregator, eval mode).

    adj_list[i]  : f32 [n_dst_i, n_src_i] binary MFG adjacency (nonzero = edge)
    dst_counts   : n_dst_i per layer (dst nodes are a prefix of src nodes, DGL convention)
    x            : f32 [n_src_0, in_feats] input node features
    params[i]    : (w_neigh [in, out], w_self [in, out], bias [1, out])
    """
    n_layers = len(adj_list)
    src_counts = [int(a.shape[1]) for a in adj_list]
    dst_counts = [int(d) for d in dst_counts]
    feats = [int(x.shape[1])] + [int(p[0].shape[1]) for p in params]
    out_pad = _round_up(feats[-1], _LANE)   # only the stored output dim is lane-padded

    mxu_rows = _mxu_row_tile()
    rr = lambda v: _round_up(v, mxu_rows)   # row dims -> MXU tile
    rf = lambda v: _round_up(v, _LANE)      # feature dims -> 128 lanes

    # Binary adjacency (exact in bf16) + f32 reciprocal degree for the mean normalization.
    a_bin, rdeg = [], []
    for a in adj_list:
        b = (a != 0).astype(jnp.float32)
        deg = jnp.maximum(b.sum(axis=1, keepdims=True), 1.0)
        a_bin.append(b.astype(jnp.bfloat16))
        rdeg.append((1.0 / deg).astype(jnp.float32))

    x_bf = x.astype(jnp.bfloat16)           # real (unpadded) contraction width

    # Per-layer weight packing + matmul-ordering choice on MXU-pass-rounded dims.
    paths, flat_w = [], []
    for i, (wn, ws, b) in enumerate(params):
        f_in, f_out = feats[i], feats[i + 1]
        f_store = out_pad if i == n_layers - 1 else f_out
        pad_n = f_store - f_out             # zero-pad N only (keeps pad columns exactly 0)
        wn_p = jnp.pad(wn, ((0, 0), (0, pad_n)))
        ws_p = jnp.pad(ws, ((0, 0), (0, pad_n)))
        b_p = jnp.pad(b, ((0, 0), (0, pad_n))).astype(jnp.float32)

        n_dst, n_src = dst_counts[i], src_counts[i]
        c_ax = (rr(n_dst) * rr(n_src) * rf(f_in)            # A @ X
                + rr(n_dst) * rf(2 * f_in) * rf(f_store))   # [agg|xd] @ [Wn;Ws]
        c_xw = (rr(n_src) * rf(f_in) * rf(f_store)          # X @ Wn
                + rr(n_dst) * rr(n_src) * rf(f_store)       # A @ (X Wn)
                + rr(n_dst) * rf(f_in) * rf(f_store))       # xd @ Ws
        if c_ax <= c_xw:
            paths.append("ax")
            flat_w.append(jnp.concatenate([wn_p, ws_p], axis=0).astype(jnp.bfloat16))
            flat_w.append(b_p)
        else:
            paths.append("xw")
            flat_w.append(wn_p.astype(jnp.bfloat16))
            flat_w.append(ws_p.astype(jnp.bfloat16))
            flat_w.append(b_p)

    inputs = a_bin + rdeg + [x_bf] + flat_w

    def full_spec(arr):
        nd = arr.ndim
        return pl.BlockSpec(arr.shape, lambda nd=nd: (0,) * nd)

    kernel = make_fused_sage_kernel(n_layers, dst_counts, paths)

    out_p = pl.pallas_call(
        kernel,
        out_shape=jax.ShapeDtypeStruct((dst_counts[-1], out_pad), jnp.float32),
        in_specs=[full_spec(arr) for arr in inputs],
        out_specs=pl.BlockSpec((dst_counts[-1], out_pad), lambda: (0, 0)),
    )(*inputs)
    return out_p[:, :n_classes]


def _reference_forward(mfgs, x, params, n_layers):
    """Pure-JAX f32 reference (mean-normalized adjacency) for correctness."""

    def layer(a, xs, xd, wn, ws, b):
        return (a @ xs) @ wn + xd @ ws + b

    a0, n_dst0 = mfgs[0]
    wn, ws, b = params[0]
    h = layer(a0, x, x[:n_dst0], wn, ws, b)
    for i in range(1, n_layers - 1):
        a, n_dst = mfgs[i]
        wn, ws, b = params[i]
        h = jnp.maximum(layer(a, h, h[:n_dst], wn, ws, b), 0.0)
    a, n_dst = mfgs[-1]
    wn, ws, b = params[-1]
    return layer(a, h, h[:n_dst], wn, ws, b)


if __name__ == "__main__":
    key = jax.random.PRNGKey(0)

    # Small, shape-consistent configuration.
    in_feats, n_hidden, n_classes, n_layers = 32, 32, 8, 3
    # MFG sizes: (num_src, num_dst) per layer; dst nodes are a prefix of src nodes,
    # and num_src of layer i == num_dst of layer i-1 (DGL block convention).
    sizes = [(64, 32), (32, 16), (16, 8)]

    # --- deterministic MFGs: binary adjacency (kernel) + mean-normalized (reference) ---
    adj_list, mfgs_norm, dst_counts = [], [], []
    for (n_src, n_dst) in sizes:
        key, k_adj = jax.random.split(key)
        adj = jax.random.bernoulli(k_adj, p=0.3, shape=(n_dst, n_src)).astype(jnp.float32)
        # guarantee each dst node has at least one neighbour (self edge; dst is prefix of src)
        adj = adj.at[jnp.arange(n_dst), jnp.arange(n_dst)].set(1.0)
        deg = jnp.maximum(adj.sum(axis=1, keepdims=True), 1.0)
        adj_list.append(adj)
        mfgs_norm.append((adj / deg, n_dst))
        dst_counts.append(n_dst)

    # --- deterministic parameter init (xavier-ish normal, zero bias) ---
    layer_dims = ([(in_feats, n_hidden)]
                  + [(n_hidden, n_hidden)] * (n_layers - 2)
                  + [(n_hidden, n_classes)])
    params = []
    for (fi, fo) in layer_dims:
        key, kn, ks = jax.random.split(key, 3)
        scale = 1.0 / np.sqrt(fi)
        params.append((jax.random.normal(kn, (fi, fo), jnp.float32) * scale,
                       jax.random.normal(ks, (fi, fo), jnp.float32) * scale,
                       jnp.zeros((1, fo), jnp.float32)))

    # --- input node features ---
    key, kx = jax.random.split(key)
    x = jax.random.normal(kx, (sizes[0][0], in_feats), jnp.float32)

    out = sage_model_forward(adj_list, dst_counts, x, params, n_classes)
    out = jax.block_until_ready(out)

    ref = _reference_forward(mfgs_norm, x, params, n_layers)
    assert out.shape == (sizes[-1][1], n_classes)
    # bf16 matmul operands (f32 accumulation, exact binary A) vs f32 reference.
    assert np.allclose(np.asarray(out), np.asarray(ref), rtol=5e-2, atol=5e-2)

    print("KERNEL_OK")
</pallas_src>

<mosaic_0001>
module attributes {stable_mosaic.version = 11 : i64} {
  func.func @kernel(%arg0: memref<32x64xbf16, #tpu.memory_space<vmem>>, %arg1: memref<16x32xbf16, #tpu.memory_space<vmem>>, %arg2: memref<8x16xbf16, #tpu.memory_space<vmem>>, %arg3: memref<32x1xf32, #tpu.memory_space<vmem>>, %arg4: memref<16x1xf32, #tpu.memory_space<vmem>>, %arg5: memref<8x1xf32, #tpu.memory_space<vmem>>, %arg6: memref<64x32xbf16, #tpu.memory_space<vmem>>, %arg7: memref<64x32xbf16, #tpu.memory_space<vmem>>, %arg8: memref<1x32xf32, #tpu.memory_space<vmem>>, %arg9: memref<64x32xbf16, #tpu.memory_space<vmem>>, %arg10: memref<1x32xf32, #tpu.memory_space<vmem>>, %arg11: memref<64x128xbf16, #tpu.memory_space<vmem>>, %arg12: memref<1x128xf32, #tpu.memory_space<vmem>>, %arg13: memref<8x128xf32, #tpu.memory_space<vmem>>) attributes {dimension_semantics = [], scalar_prefetch = 0 : i64, scratch_operands = 0 : i64, tpu.core_type = #tpu.core_type<tc>} {
    %c0 = arith.constant 0 : index
    %c0_0 = arith.constant 0 : index
    %0 = vector.load %arg6[%c0, %c0_0] : memref<64x32xbf16, #tpu.memory_space<vmem>>, vector<64x32xbf16>
    %c0_1 = arith.constant 0 : index
    %c0_2 = arith.constant 0 : index
    %1 = vector.load %arg0[%c0_1, %c0_2] : memref<32x64xbf16, #tpu.memory_space<vmem>>, vector<32x64xbf16>
    %c0_3 = arith.constant 0 : index
    %c0_4 = arith.constant 0 : index
    %2 = vector.load %arg3[%c0_3, %c0_4] : memref<32x1xf32, #tpu.memory_space<vmem>>, vector<32x1xf32>
    %3 = vector.extract_strided_slice %0 {offsets = [0, 0], sizes = [32, 32], strides = [1, 1]} : vector<64x32xbf16> to vector<32x32xbf16>
    %cst = arith.constant dense<0.000000e+00> : vector<32x32xf32>
    %4 = tpu.matmul %1, %0, %cst {dimension_numbers = #tpu.dot_dimension_numbers<[1], [0], [0], [1], [0, 0, 1, 1], [], []>} : vector<32x64xbf16>, vector<64x32xbf16>, vector<32x32xf32> -> vector<32x32xf32>
    %5 = vector.broadcast %2 : vector<32x1xf32> to vector<32x32xf32>
    %6 = arith.mulf %4, %5 : vector<32x32xf32>
    %7 = arith.truncf %6 : vector<32x32xf32> to vector<32x32xbf16>
    %8 = tpu.concatenate %7, %3 in 1 : vector<32x32xbf16>, vector<32x32xbf16> -> vector<32x64xbf16>
    %c0_5 = arith.constant 0 : index
    %c0_6 = arith.constant 0 : index
    %9 = vector.load %arg7[%c0_5, %c0_6] : memref<64x32xbf16, #tpu.memory_space<vmem>>, vector<64x32xbf16>
    %cst_7 = arith.constant dense<0.000000e+00> : vector<32x32xf32>
    %10 = tpu.matmul %8, %9, %cst_7 {dimension_numbers = #tpu.dot_dimension_numbers<[1], [0], [0], [1], [0, 0, 1, 1], [], []>} : vector<32x64xbf16>, vector<64x32xbf16>, vector<32x32xf32> -> vector<32x32xf32>
    %c0_8 = arith.constant 0 : index
    %c0_9 = arith.constant 0 : index
    %11 = vector.load %arg8[%c0_8, %c0_9] : memref<1x32xf32, #tpu.memory_space<vmem>>, vector<1x32xf32>
    %12 = vector.broadcast %11 : vector<1x32xf32> to vector<32x32xf32>
    %13 = arith.addf %10, %12 : vector<32x32xf32>
    %14 = arith.truncf %13 : vector<32x32xf32> to vector<32x32xbf16>
    %c0_10 = arith.constant 0 : index
    %c0_11 = arith.constant 0 : index
    %15 = vector.load %arg1[%c0_10, %c0_11] : memref<16x32xbf16, #tpu.memory_space<vmem>>, vector<16x32xbf16>
    %c0_12 = arith.constant 0 : index
    %c0_13 = arith.constant 0 : index
    %16 = vector.load %arg4[%c0_12, %c0_13] : memref<16x1xf32, #tpu.memory_space<vmem>>, vector<16x1xf32>
    %17 = vector.extract_strided_slice %14 {offsets = [0, 0], sizes = [16, 32], strides = [1, 1]} : vector<32x32xbf16> to vector<16x32xbf16>
    %cst_14 = arith.constant dense<0.000000e+00> : vector<16x32xf32>
    %18 = tpu.matmul %15, %14, %cst_14 {dimension_numbers = #tpu.dot_dimension_numbers<[1], [0], [0], [1], [0, 0, 1, 1], [], []>} : vector<16x32xbf16>, vector<32x32xbf16>, vector<16x32xf32> -> vector<16x32xf32>
    %19 = vector.broadcast %16 : vector<16x1xf32> to vector<16x32xf32>
    %20 = arith.mulf %18, %19 : vector<16x32xf32>
    %21 = arith.truncf %20 : vector<16x32xf32> to vector<16x32xbf16>
    %22 = tpu.concatenate %21, %17 in 1 : vector<16x32xbf16>, vector<16x32xbf16> -> vector<16x64xbf16>
    %c0_15 = arith.constant 0 : index
    %c0_16 = arith.constant 0 : index
    %23 = vector.load %arg9[%c0_15, %c0_16] : memref<64x32xbf16, #tpu.memory_space<vmem>>, vector<64x32xbf16>
    %cst_17 = arith.constant dense<0.000000e+00> : vector<16x32xf32>
    %24 = tpu.matmul %22, %23, %cst_17 {dimension_numbers = #tpu.dot_dimension_numbers<[1], [0], [0], [1], [0, 0, 1, 1], [], []>} : vector<16x64xbf16>, vector<64x32xbf16>, vector<16x32xf32> -> vector<16x32xf32>
    %c0_18 = arith.constant 0 : index
    %c0_19 = arith.constant 0 : index
    %25 = vector.load %arg10[%c0_18, %c0_19] : memref<1x32xf32, #tpu.memory_space<vmem>>, vector<1x32xf32>
    %26 = vector.broadcast %25 : vector<1x32xf32> to vector<16x32xf32>
    %27 = arith.addf %24, %26 : vector<16x32xf32>
    %cst_20 = arith.constant 0.000000e+00 : f32
    %28 = vector.broadcast %cst_20 : f32 to vector<16x32xf32>
    %29 = arith.maximumf %27, %28 : vector<16x32xf32>
    %30 = arith.truncf %29 : vector<16x32xf32> to vector<16x32xbf16>
    %c0_21 = arith.constant 0 : index
    %c0_22 = arith.constant 0 : index
    %31 = vector.load %arg2[%c0_21, %c0_22] : memref<8x16xbf16, #tpu.memory_space<vmem>>, vector<8x16xbf16>
    %c0_23 = arith.constant 0 : index
    %c0_24 = arith.constant 0 : index
    %32 = vector.load %arg5[%c0_23, %c0_24] : memref<8x1xf32, #tpu.memory_space<vmem>>, vector<8x1xf32>
    %33 = vector.extract_strided_slice %30 {offsets = [0, 0], sizes = [8, 32], strides = [1, 1]} : vector<16x32xbf16> to vector<8x32xbf16>
    %cst_25 = arith.constant dense<0.000000e+00> : vector<8x32xf32>
    %34 = tpu.matmul %31, %30, %cst_25 {dimension_numbers = #tpu.dot_dimension_numbers<[1], [0], [0], [1], [0, 0, 1, 1], [], []>} : vector<8x16xbf16>, vector<16x32xbf16>, vector<8x32xf32> -> vector<8x32xf32>
    %35 = vector.broadcast %32 : vector<8x1xf32> to vector<8x32xf32>
    %36 = arith.mulf %34, %35 : vector<8x32xf32>
    %37 = arith.truncf %36 : vector<8x32xf32> to vector<8x32xbf16>
    %38 = tpu.concatenate %37, %33 in 1 : vector<8x32xbf16>, vector<8x32xbf16> -> vector<8x64xbf16>
    %c0_26 = arith.constant 0 : index
    %c0_27 = arith.constant 0 : index
    %39 = vector.load %arg11[%c0_26, %c0_27] : memref<64x128xbf16, #tpu.memory_space<vmem>>, vector<64x128xbf16>
    %cst_28 = arith.constant dense<0.000000e+00> : vector<8x128xf32>
    %40 = tpu.matmul %38, %39, %cst_28 {dimension_numbers = #tpu.dot_dimension_numbers<[1], [0], [0], [1], [0, 0, 1, 1], [], []>} : vector<8x64xbf16>, vector<64x128xbf16>, vector<8x128xf32> -> vector<8x128xf32>
    %c0_29 = arith.constant 0 : index
    %c0_30 = arith.constant 0 : index
    %41 = vector.load %arg12[%c0_29, %c0_30] : memref<1x128xf32, #tpu.memory_space<vmem>>, vector<1x128xf32>
    %42 = vector.broadcast %41 : vector<1x128xf32> to vector<8x128xf32>
    %43 = arith.addf %40, %42 : vector<8x128xf32>
    %c0_31 = arith.constant 0 : index
    %c0_32 = arith.constant 0 : index
    %44 = vector.load %arg13[%c0_31, %c0_32] : memref<8x128xf32, #tpu.memory_space<vmem>>, vector<8x128xf32>
    tpu.vector_store %arg13[%c0_31, %c0_32], %43 {strides = array<i32>} : memref<8x128xf32, #tpu.memory_space<vmem>>, vector<8x128xf32>,
    return
  }
}

</mosaic_0001>

<llo_original>
// kernel: tpu_custom_call.1
$region0: #{tpu_custom_call.1}
  #allocation0 [shape = 'u32[]', space=smem, size = 0x4, offset = 0x4, fixed_abs, tag = 'smem constant byte address 0x4 - core index']
  #allocation1 [shape = 'u32[72,128]{1,0:T(1,128)}', space=vmem, size = 0x9000, scoped, tag = 'internal scratch']
  %s0 = inlined_call_operand.vmem [shape: bf16[32,64], index: 0, kind: input, shape index: {}]
  %s1 = inlined_call_operand.vmem [shape: bf16[16,32], index: 1, kind: input, shape index: {}]
  %s2 = inlined_call_operand.vmem [shape: bf16[8,16], index: 2, kind: input, shape index: {}]
  %s3 = inlined_call_operand.vmem [shape: f32[32,1], index: 3, kind: input, shape index: {}]
  %s4 = inlined_call_operand.vmem [shape: f32[16,1], index: 4, kind: input, shape index: {}]
  %s5 = inlined_call_operand.vmem [shape: f32[8,1], index: 5, kind: input, shape index: {}]
  %s6 = inlined_call_operand.vmem [shape: bf16[64,32], index: 6, kind: input, shape index: {}]
  %s7 = inlined_call_operand.vmem [shape: bf16[64,32], index: 7, kind: input, shape index: {}]
  %s8 = inlined_call_operand.vmem [shape: f32[1,32], index: 8, kind: input, shape index: {}]
  %s9 = inlined_call_operand.vmem [shape: bf16[64,32], index: 9, kind: input, shape index: {}]
  %s10 = inlined_call_operand.vmem [shape: f32[1,32], index: 10, kind: input, shape index: {}]
  %s11 = inlined_call_operand.vmem [shape: bf16[64,128], index: 11, kind: input, shape index: {}]
  %s12 = inlined_call_operand.vmem [shape: f32[1,128], index: 12, kind: input, shape index: {}]
  %s13 = inlined_call_operand.hbm [shape: f32[8,128], index: 13, kind: output, shape index: {}]
  %s14 = sld [smem:[#allocation0]]
  $region62: #{tpu_custom_call.1} parent=0
    _
  %s16 = ssub.s32 1, %s14
  %s17 = scalar_select 0, %s16, %s14
  $region1: #{tpu_custom_call.1} parent=0
    #allocation2 [shape = 'u8[4096]{0}', space=vmem, size = 0x1000, scoped, tag = 'output window, operand 0, single buffered']
    #allocation3 [shape = 's32[1]{0}', space=sflag, size = 0x4, scoped, tag = 'scoped memory for tpu_custom_call.1']
    %18 = vsyncpa [#allocation3], 0
    // Predicated region
    $region2: #{tpu_custom_call.1} parent=1 // pred_check
      _
    $region3: #{tpu_custom_call.1} parent=1 // pred_check_branch
      %20 = sbr.rel (0) target = $region5
    $region4: #{tpu_custom_call.1} parent=1 // pred_region
      _
    $region5: #{tpu_custom_call.1} parent=1 // pred_fallthru
      _
    // Predicated region
    $region6: #{tpu_custom_call.1} parent=1 // pred_check
      _
    $region7: #{tpu_custom_call.1} parent=1 // pred_check_branch
      %22 = sbr.rel (0) target = $region9
    $region8: #{tpu_custom_call.1} parent=1 // pred_region
      _
    $region9: #{tpu_custom_call.1} parent=1 // pred_fallthru
      _
    // Predicated region
    $region10: #{tpu_custom_call.1} parent=1 // pred_check
      _
    $region11: #{tpu_custom_call.1} parent=1 // pred_check_branch
      %24 = sbr.rel (0) target = $region13
    $region12: #{tpu_custom_call.1} parent=1 // pred_region
      _
    $region13: #{tpu_custom_call.1} parent=1 // pred_fallthru
      _
    // Predicated region
    $region14: #{tpu_custom_call.1} parent=1 // pred_check
      _
    $region15: #{tpu_custom_call.1} parent=1 // pred_check_branch
      %26 = sbr.rel (0) target = $region17
    $region16: #{tpu_custom_call.1} parent=1 // pred_region
      _
    $region17: #{tpu_custom_call.1} parent=1 // pred_fallthru
      _
    // Predicated region
    $region18: #{tpu_custom_call.1} parent=1 // pred_check
      _
    $region19: #{tpu_custom_call.1} parent=1 // pred_check_branch
      %28 = sbr.rel (0) target = $region21
    $region20: #{tpu_custom_call.1} parent=1 // pred_region
      _
    $region21: #{tpu_custom_call.1} parent=1 // pred_fallthru
      _
    // Predicated region
    $region22: #{tpu_custom_call.1} parent=1 // pred_check
      _
    $region23: #{tpu_custom_call.1} parent=1 // pred_check_branch
      %30 = sbr.rel (0) target = $region25
    $region24: #{tpu_custom_call.1} parent=1 // pred_region
      _
    $region25: #{tpu_custom_call.1} parent=1 // pred_fallthru
      _
    // Predicated region
    $region26: #{tpu_custom_call.1} parent=1 // pred_check
      _
    $region27: #{tpu_custom_call.1} parent=1 // pred_check_branch
      %32 = sbr.rel (0) target = $region29
    $region28: #{tpu_custom_call.1} parent=1 // pred_region
      _
    $region29: #{tpu_custom_call.1} parent=1 // pred_fallthru
      _
    // Predicated region
    $region30: #{tpu_custom_call.1} parent=1 // pred_check
      _
    $region31: #{tpu_custom_call.1} parent=1 // pred_check_branch
      %34 = sbr.rel (0) target = $region33
    $region32: #{tpu_custom_call.1} parent=1 // pred_region
      _
    $region33: #{tpu_custom_call.1} parent=1 // pred_fallthru
      _
    // Predicated region
    $region34: #{tpu_custom_call.1} parent=1 // pred_check
      _
    $region35: #{tpu_custom_call.1} parent=1 // pred_check_branch
      %36 = sbr.rel (0) target = $region37
    $region36: #{tpu_custom_call.1} parent=1 // pred_region
      _
    $region37: #{tpu_custom_call.1} parent=1 // pred_fallthru
      _
    // Predicated region
    $region38: #{tpu_custom_call.1} parent=1 // pred_check
      _
    $region39: #{tpu_custom_call.1} parent=1 // pred_check_branch
      %38 = sbr.rel (0) target = $region41
    $region40: #{tpu_custom_call.1} parent=1 // pred_region
      _
    $region41: #{tpu_custom_call.1} parent=1 // pred_fallthru
      _
    // Predicated region
    $region42: #{tpu_custom_call.1} parent=1 // pred_check
      _
    $region43: #{tpu_custom_call.1} parent=1 // pred_check_branch
      %40 = sbr.rel (0) target = $region45
    $region44: #{tpu_custom_call.1} parent=1 // pred_region
      _
    $region45: #{tpu_custom_call.1} parent=1 // pred_fallthru
      _
    // Predicated region
    $region46: #{tpu_custom_call.1} parent=1 // pred_check
      _
    $region47: #{tpu_custom_call.1} parent=1 // pred_check_branch
      %42 = sbr.rel (0) target = $region49
    $region48: #{tpu_custom_call.1} parent=1 // pred_region
      _
    $region49: #{tpu_custom_call.1} parent=1 // pred_fallthru
      _
    // Predicated region
    $region50: #{tpu_custom_call.1} parent=1 // pred_check
      _
    $region51: #{tpu_custom_call.1} parent=1 // pred_check_branch
      %44 = sbr.rel (0) target = $region53
    $region52: #{tpu_custom_call.1} parent=1 // pred_region
      _
    $region53: #{tpu_custom_call.1} parent=1 // pred_fallthru
      _
    %v46 = vld [vmem:[%s6] sm:$0xf]
    %v47 = vld [vmem:[%s6 + $0x4] sm:$0xf]
    %v48 = vld [vmem:[%s6 + $0x8] sm:$0xf]
    %v49 = vld [vmem:[%s6 + $0xc] sm:$0xf]
    %v50 = vld [vmem:[%s6 + $0x10] sm:$0xf]
    %v51 = vld [vmem:[%s6 + $0x14] sm:$0xf]
    %v52 = vld [vmem:[%s6 + $0x18] sm:$0xf]
    %v53 = vld [vmem:[%s6 + $0x1c] sm:$0xf]
    %v54 = vld [vmem:[%s0] sm:$0xf]
    %v55 = vld [vmem:[%s0 + $0x4] sm:$0xf]
    %v56 = vld [vmem:[%s0 + $0x8] sm:$0xf]
    %v57 = vld [vmem:[%s0 + $0xc] sm:$0xf]
    %v58 = vld [vmem:[%s3] sm:$0xff]
    %v59 = vld [vmem:[%s3 + $0x8] sm:$0xff]
    %v60 = vld [vmem:[%s3 + $0x10] sm:$0xff]
    %v61 = vld [vmem:[%s3 + $0x18] sm:$0xff]
    %v66 = vunpack.c.l.b16 %v54
    %v67 = vunpack.c.l.b16 %v55
    %v68 = vunpack.c.l.b16 %v56
    %v69 = vunpack.c.l.b16 %v57
    %v70 = vpack.c.b16 %v67, %v66
    %v71 = vpack.c.b16 %v69, %v68
    %v80 = vunpack.c.l.b16 %v46
    %v81 = vunpack.c.l.b16 %v47
    %v82 = vunpack.c.l.b16 %v48
    %v83 = vunpack.c.l.b16 %v49
    %v84 = vunpack.c.l.b16 %v50
    %v85 = vunpack.c.l.b16 %v51
    %v86 = vunpack.c.l.b16 %v52
    %v87 = vunpack.c.l.b16 %v53
    %v88 = vpack.c.b16 %v81, %v80
    %v89 = vpack.c.b16 %v83, %v82
    %v90 = vpack.c.b16 %v85, %v84
    %v91 = vpack.c.b16 %v87, %v86
    %vm96 = vcmask 523264
    %v98 = vsel %vm96, %v70, 0
    %v101 = vsel %vm96, %v71, 0
    %103 = vmatpush.bf16.msra.mxu0 0
    %104 = vmatpush.bf16.msra.mxu0 0
    %105 = vmatpush.bf16.msra.mxu0 0
    %106 = vmatpush.bf16.msra.mxu0 0
    %107 = vmatpush.bf16.msra.mxu0 %v91
    %108 = vmatpush.bf16.msra.mxu0 %v90
    %109 = vmatpush.bf16.msra.mxu0 %v89
    %110 = vmatpush.bf16.msra.mxu0 %v88
    %111 = vmatmul.bf16.gmra.mxu0 %v98
    %v112 = vpop.f32.mrf.mxu0
    %v113 = vadd.f32 0.0, %v112
    %v114 = vpop.f32.mrf.mxu0
    %v115 = vadd.f32 0.0, %v114
    %116 = vmatmul.bf16.gmra.mxu0 %v101
    %v117 = vpop.f32.mrf.mxu0
    %v118 = vadd.f32 0.0, %v117
    %v119 = vpop.f32.mrf.mxu0
    %v120 = vadd.f32 0.0, %v119
    %121 = vdwg.mxu0
    %123 = vset.pattern.permute.xlu0 0
    %124 = vperm.xlu0 %123, %v58
    %v125 = vpop.permute.xlu0 %124
    %128 = vset.pattern.permute.xlu0 0
    %129 = vperm.xlu0 %128, %v59
    %v130 = vpop.permute.xlu0 %129
    %133 = vset.pattern.permute.xlu0 0
    %134 = vperm.xlu0 %133, %v60
    %v135 = vpop.permute.xlu0 %134
    %138 = vset.pattern.permute.xlu0 0
    %139 = vperm.xlu0 %138, %v61
    %v140 = vpop.permute.xlu0 %139
    %v142 = vmul.f32 %v113, %v125
    %v143 = vmul.f32 %v115, %v130
    %v144 = vmul.f32 %v118, %v135
    %v145 = vmul.f32 %v120, %v140
    %v146 = vpack.c.bf16 %v142, %v142
    %v147 = vpack.c.bf16 %v143, %v143
    %v148 = vpack.c.bf16 %v144, %v144
    %v149 = vpack.c.bf16 %v145, %v145
    %v154 = vunpack.c.l.b16 %v146
    %v155 = vunpack.c.l.b16 %v147
    %v156 = vunpack.c.l.b16 %v148
    %v157 = vunpack.c.l.b16 %v149
    %v158 = vpack.c.b16 %v155, %v154
    %v159 = vpack.c.b16 %v157, %v156
    %160 = vrot.lane.b32.xlu0 %v88, 32
    %v161 = vpop.permute.xlu0 %160
    %162 = vrot.lane.b32.xlu0 %v89, 32
    %v163 = vpop.permute.xlu0 %162
    %vm164 = vcmask 261120
    %v167 = vsel %vm164, %v158, %v161
    %v170 = vsel %vm164, %v159, %v163
    %v171 = vld [vmem:[%s7] sm:$0xf]
    %v172 = vld [vmem:[%s7 + $0x4] sm:$0xf]
    %v173 = vld [vmem:[%s7 + $0x8] sm:$0xf]
    %v174 = vld [vmem:[%s7 + $0xc] sm:$0xf]
    %v175 = vld [vmem:[%s7 + $0x10] sm:$0xf]
    %v176 = vld [vmem:[%s7 + $0x14] sm:$0xf]
    %v177 = vld [vmem:[%s7 + $0x18] sm:$0xf]
    %v178 = vld [vmem:[%s7 + $0x1c] sm:$0xf]
    %v179 = vld [vmem:[%s8] sm:$0x1]
    %v181 = vperm.slane %v179, 0
    %v191 = vunpack.c.l.b16 %v171
    %v192 = vunpack.c.l.b16 %v172
    %v193 = vunpack.c.l.b16 %v173
    %v194 = vunpack.c.l.b16 %v174
    %v195 = vunpack.c.l.b16 %v175
    %v196 = vunpack.c.l.b16 %v176
    %v197 = vunpack.c.l.b16 %v177
    %v198 = vunpack.c.l.b16 %v178
    %v199 = vpack.c.b16 %v192, %v191
    %v200 = vpack.c.b16 %v194, %v193
    %v201 = vpack.c.b16 %v196, %v195
    %v202 = vpack.c.b16 %v198, %v197
    %v207 = vsel %vm96, %v167, 0
    %v209 = vsel %vm96, %v170, 0
    %211 = vmatpush.bf16.msra.mxu0 0
    %212 = vmatpush.bf16.msra.mxu0 0
    %213 = vmatpush.bf16.msra.mxu0 0
    %214 = vmatpush.bf16.msra.mxu0 0
    %215 = vmatpush.bf16.msra.mxu0 %v202
    %216 = vmatpush.bf16.msra.mxu0 %v201
    %217 = vmatpush.bf16.msra.mxu0 %v200
    %218 = vmatpush.bf16.msra.mxu0 %v199
    %219 = vmatmul.bf16.gmra.mxu0 %v207
    %v220 = vpop.f32.mrf.mxu0
    %v221 = vadd.f32 %v181, %v220
    %v222 = vpop.f32.mrf.mxu0
    %v223 = vadd.f32 %v181, %v222
    %224 = vmatmul.bf16.gmra.mxu0 %v209
    %v225 = vpop.f32.mrf.mxu0
    %v226 = vadd.f32 %v181, %v225
    %v227 = vpop.f32.mrf.mxu0
    %v228 = vadd.f32 %v181, %v227
    %229 = vdwg.mxu0
    %v230 = vpack.c.bf16 %v221, %v221
    %v231 = vpack.c.bf16 %v223, %v223
    %v232 = vpack.c.bf16 %v226, %v226
    %v233 = vpack.c.bf16 %v228, %v228
    %v234 = vld [vmem:[%s1] sm:$0xf]
    %v235 = vld [vmem:[%s1 + $0x4] sm:$0xf]
    %v236 = vld [vmem:[%s4] sm:$0xff]
    %v237 = vld [vmem:[%s4 + $0x8] sm:$0xff]
    %v240 = vunpack.c.l.b16 %v234
    %v241 = vunpack.c.l.b16 %v235
    %v242 = vpack.c.b16 %v241, %v240
    %v247 = vunpack.c.l.b16 %v230
    %v248 = vunpack.c.l.b16 %v231
    %v249 = vunpack.c.l.b16 %v232
    %v250 = vunpack.c.l.b16 %v233
    %v251 = vpack.c.b16 %v248, %v247
    %v252 = vpack.c.b16 %v250, %v249
    %v256 = vsel %vm164, %v242, 0
    %258 = vmatpush.bf16.msra.mxu0 0
    %259 = vmatpush.bf16.msra.mxu0 0
    %260 = vmatpush.bf16.msra.mxu0 0
    %261 = vmatpush.bf16.msra.mxu0 0
    %262 = vmatpush.bf16.msra.mxu0 0
    %263 = vmatpush.bf16.msra.mxu0 0
    %264 = vmatpush.bf16.msra.mxu0 %v252
    %265 = vmatpush.bf16.msra.mxu0 %v251
    %266 = vmatmul.bf16.gmra.mxu0 %v256
    %v267 = vpop.f32.mrf.mxu0
    %v268 = vadd.f32 0.0, %v267
    %v269 = vpop.f32.mrf.mxu0
    %v270 = vadd.f32 0.0, %v269
    %271 = vdwg.mxu0
    %273 = vset.pattern.permute.xlu0 0
    %274 = vperm.xlu0 %273, %v236
    %v275 = vpop.permute.xlu0 %274
    %278 = vset.pattern.permute.xlu0 0
    %279 = vperm.xlu0 %278, %v237
    %v280 = vpop.permute.xlu0 %279
    %v282 = vmul.f32 %v268, %v275
    %v283 = vmul.f32 %v270, %v280
    %v284 = vpack.c.bf16 %v282, %v282
    %v285 = vpack.c.bf16 %v283, %v283
    %v288 = vunpack.c.l.b16 %v284
    %v289 = vunpack.c.l.b16 %v285
    %v290 = vpack.c.b16 %v289, %v288
    %291 = vrot.lane.b32.xlu0 %v251, 32
    %v292 = vpop.permute.xlu0 %291
    %v295 = vsel %vm164, %v290, %v292
    %v296 = vld [vmem:[%s9] sm:$0xf]
    %v297 = vld [vmem:[%s9 + $0x4] sm:$0xf]
    %v298 = vld [vmem:[%s9 + $0x8] sm:$0xf]
    %v299 = vld [vmem:[%s9 + $0xc] sm:$0xf]
    %v300 = vld [vmem:[%s9 + $0x10] sm:$0xf]
    %v301 = vld [vmem:[%s9 + $0x14] sm:$0xf]
    %v302 = vld [vmem:[%s9 + $0x18] sm:$0xf]
    %v303 = vld [vmem:[%s9 + $0x1c] sm:$0xf]
    %v304 = vld [vmem:[%s10] sm:$0x1]
    %v306 = vperm.slane %v304, 0
    %v316 = vunpack.c.l.b16 %v296
    %v317 = vunpack.c.l.b16 %v297
    %v318 = vunpack.c.l.b16 %v298
    %v319 = vunpack.c.l.b16 %v299
    %v320 = vunpack.c.l.b16 %v300
    %v321 = vunpack.c.l.b16 %v301
    %v322 = vunpack.c.l.b16 %v302
    %v323 = vunpack.c.l.b16 %v303
    %v324 = vpack.c.b16 %v317, %v316
    %v325 = vpack.c.b16 %v319, %v318
    %v326 = vpack.c.b16 %v321, %v320
    %v327 = vpack.c.b16 %v323, %v322
    %v332 = vsel %vm96, %v295, 0
    %334 = vmatpush.bf16.msra.mxu0 0
    %335 = vmatpush.bf16.msra.mxu0 0
    %336 = vmatpush.bf16.msra.mxu0 0
    %337 = vmatpush.bf16.msra.mxu0 0
    %338 = vmatpush.bf16.msra.mxu0 %v327
    %339 = vmatpush.bf16.msra.mxu0 %v326
    %340 = vmatpush.bf16.msra.mxu0 %v325
    %341 = vmatpush.bf16.msra.mxu0 %v324
    %342 = vmatmul.bf16.gmra.mxu0 %v332
    %v343 = vpop.f32.mrf.mxu0
    %v344 = vadd.f32 %v306, %v343
    %v345 = vpop.f32.mrf.mxu0
    %v346 = vadd.f32 %v306, %v345
    %347 = vdwg.mxu0
    %v348 = vmax.f32 %v344, 0.0
    %v349 = vmax.f32 %v346, 0.0
    %v350 = vpack.c.bf16 %v348, %v348
    %v351 = vpack.c.bf16 %v349, %v349
    %v352 = vld [vmem:[%s2] sm:$0xf]
    %v353 = vld [vmem:[%s5] sm:$0xff]
    %v356 = vunpack.c.l.b16 %v350
    %v357 = vunpack.c.l.b16 %v351
    %v358 = vpack.c.b16 %v357, %v356
    %vm360 = vcmask 130048
    %v362 = vsel %vm360, %v352, 0
    %364 = vmatpush.bf16.msra.mxu0 0
    %365 = vmatpush.bf16.msra.mxu0 0
    %366 = vmatpush.bf16.msra.mxu0 0
    %367 = vmatpush.bf16.msra.mxu0 0
    %368 = vmatpush.bf16.msra.mxu0 0
    %369 = vmatpush.bf16.msra.mxu0 0
    %370 = vmatpush.bf16.msra.mxu0 0
    %371 = vmatpush.bf16.msra.mxu0 %v358
    %372 = vmatmul.bf16.gmra.mxu0 %v362
    %v373 = vpop.f32.mrf.mxu0
    %v374 = vadd.f32 0.0, %v373
    %v375 = vpop.f32.mrf.mxu0
    %376 = vdwg.mxu0
    %378 = vset.pattern.permute.xlu0 0
    %379 = vperm.xlu0 %378, %v353
    %v380 = vpop.permute.xlu0 %379
    %v382 = vmul.f32 %v374, %v380
    %v383 = vpack.c.bf16 %v382, %v382
    %v384 = vpack.c.b16 %v356, %v356
    %385 = vrot.lane.b32.xlu0 %v384, 32
    %v386 = vpop.permute.xlu0 %385
    %v389 = vsel %vm164, %v383, %v386
    %v390 = vld [vmem:[%s11] sm:$0xf]
    %v391 = vld [vmem:[%s11 + $0x4] sm:$0xf]
    %v392 = vld [vmem:[%s11 + $0x8] sm:$0xf]
    %v393 = vld [vmem:[%s11 + $0xc] sm:$0xf]
    %v394 = vld [vmem:[%s11 + $0x10] sm:$0xf]
    %v395 = vld [vmem:[%s11 + $0x14] sm:$0xf]
    %v396 = vld [vmem:[%s11 + $0x18] sm:$0xf]
    %v397 = vld [vmem:[%s11 + $0x1c] sm:$0xf]
    %v398 = vld [vmem:[%s12] sm:$0x1]
    %v400 = vperm.slane %v398, 0
    %v410 = vunpack.c.l.b16 %v390
    %v411 = vunpack.c.l.b16 %v391
    %v412 = vunpack.c.l.b16 %v392
    %v413 = vunpack.c.l.b16 %v393
    %v414 = vunpack.c.l.b16 %v394
    %v415 = vunpack.c.l.b16 %v395
    %v416 = vunpack.c.l.b16 %v396
    %v417 = vunpack.c.l.b16 %v397
    %v418 = vpack.c.b16 %v411, %v410
    %v419 = vpack.c.b16 %v413, %v412
    %v420 = vpack.c.b16 %v415, %v414
    %v421 = vpack.c.b16 %v417, %v416
    %v426 = vsel %vm96, %v389, 0
    %428 = vmatpush.bf16.msra.mxu0 0
    %429 = vmatpush.bf16.msra.mxu0 0
    %430 = vmatpush.bf16.msra.mxu0 0
    %431 = vmatpush.bf16.msra.mxu0 0
    %432 = vmatpush.bf16.msra.mxu0 %v421
    %433 = vmatpush.bf16.msra.mxu0 %v420
    %434 = vmatpush.bf16.msra.mxu0 %v419
    %435 = vmatpush.bf16.msra.mxu0 %v418
    %436 = vmatmul.bf16.gmra.mxu0 %v426
    %v437 = vpop.f32.mrf.mxu0
    %v438 = vadd.f32 %v400, %v437
    %v439 = vpop.f32.mrf.mxu0
    %440 = vdwg.mxu0
    %441 = vst [vmem:[#allocation2] sm:$0xff] %v438
    // Predicated region
    $region54: #{tpu_custom_call.1} parent=1 // pred_check
      _
    $region55: #{tpu_custom_call.1} parent=1 // pred_check_branch
      %443 = sbr.rel (0) target = $region57
    $region56: #{tpu_custom_call.1} parent=1 // pred_region
      %445 = vsyncadd [#allocation3], 0
      %s447 = sshll.u32 [#allocation2], 4
      %s448 = int_to_ptr.vmem [resolvable:$true] %s447
      %s449 = sshll.u32 %s13, 4
      %s450 = int_to_ptr.hbm [resolvable:$true] %s449
      %452 = dma.vmem_to_hbm [thread:$0]  %s448, 128, %s450, [#allocation3]
    $region57: #{tpu_custom_call.1} parent=1 // pred_fallthru
      _
    // Predicated region
    $region58: #{tpu_custom_call.1} parent=1 // pred_check
      _
    $region59: #{tpu_custom_call.1} parent=1 // pred_check_branch
      %454 = sbr.rel (0) target = $region61
    $region60: #{tpu_custom_call.1} parent=1 // pred_region
      %456 = dma.done [#allocation3], 128
    $region61: #{tpu_custom_call.1} parent=1 // pred_fallthru
      _
    %457 = vsyncpa [#allocation3], 1

</llo_original>
